<compile_context>
chip_gen: v5e
topology: v5e:2x2
jax: 0.10.0
libtpu: 0.0.40
codegen_flags: <defaults>
</compile_context>

<pallas_src>
import functools

import jax
import jax.numpy as jnp
from jax.experimental import pallas as pl
from jax.experimental.pallas import tpu as pltpu


def _use_bf16_tanh():
    """bf16 EUP path exists on v6e/v7x; v5e has no bf16 VPU/EUP."""
    try:
        kind = jax.devices()[0].device_kind.lower()
    except Exception:  # no TPU visible at trace time -> default bf16 path
        return True
    is_v5e = ("v5e" in kind) or ("v5 lite" in kind) or ("v5lite" in kind)
    return not is_v5e


def critic_kernel(state_ref, w1_ref, b1_ref, w2_ref, b2_ref, w3_ref, b3_ref,
                  v_ref, *, bf16_tanh):
    # state arrives f32; cast to bf16 in-kernel (removes a separate XLA
    # convert pass over state every forward).
    x = state_ref[...].astype(jnp.bfloat16)

    # fc1 (bf16 MXU, f32 accumulate) + bias + tanh
    h = jnp.dot(x, w1_ref[...], preferred_element_type=jnp.float32)
    h = h + b1_ref[...]
    if bf16_tanh:                       # v6e / v7x: bf16 EUP
        h = jnp.tanh(h.astype(jnp.bfloat16))
    else:                               # v5e: f32 EUP, cast only for MXU input
        h = jnp.tanh(h).astype(jnp.bfloat16)

    # fc2 (bf16 MXU, f32 accumulate) + bias + tanh
    h = jnp.dot(h, w2_ref[...], preferred_element_type=jnp.float32)
    h = h + b2_ref[...]
    if bf16_tanh:
        h = jnp.tanh(h.astype(jnp.bfloat16))
    else:
        h = jnp.tanh(h).astype(jnp.bfloat16)

    # value head (fc2 -> 1), lane-dense: [1, fc2] x [tb, fc2] (contract fc2)
    # -> [1, tb] row.  Unmasked stores; MXU has huge slack so the f32 matmul
    # is free.  Scalar bias comes from SMEM.
    v = jax.lax.dot_general(w3_ref[...], h.astype(jnp.float32),
                            (((1,), (1,)), ((), ())),
                            preferred_element_type=jnp.float32)
    v_ref[...] = v + b3_ref[0, 0]


def prepare_params(params_f32):
    """One-time conversion of f32 PyTorch-style params into kernel layout."""
    return {
        "w1": params_f32["w1"].astype(jnp.bfloat16),       # [in, fc1]
        "b1": params_f32["b1"].astype(jnp.float32),         # [1, fc1]
        "w2": params_f32["w2"].astype(jnp.bfloat16),        # [fc1, fc2]
        "b2": params_f32["b2"].astype(jnp.float32),          # [1, fc2]
        "w3_row": params_f32["w3"].T.astype(jnp.float32),    # [1, fc2]
        "b3": params_f32["b3"].astype(jnp.float32),           # [1, 1]
    }


def continuous_critic_forward(state, kparams, tb=None):
    """Pallas forward of ContinuousCriticNetwork.

    state:   [B, input_dim] float32
    kparams: output of prepare_params()
    returns: [B, 1] float32
    """
    B, in_dim = state.shape
    fc1 = kparams["w1"].shape[1]
    fc2 = kparams["w2"].shape[1]

    # --- batch-tile selection ------------------------------------------------
    # The kernel is per-grid-step overhead bound (~0.35 us/step), so use the
    # biggest tile that still gives >= 2 tiles at large B (v7x has 2 TCs and
    # the "parallel" batch axis is what shards across them).
    if tb is None:
        if B < 512:
            tb = max(16, ((B + 15) // 16) * 16)          # single 16-aligned tile
        else:
            half = (B + 1) // 2
            tb = min(2048, ((half + 127) // 128) * 128)  # >= 2 tiles, <= 2048
    assert tb > 0 and tb % 16 == 0, "tb must be a positive multiple of 16"

    num_tiles = pl.cdiv(B, tb)
    b_pad = num_tiles * tb
    state_p = state if b_pad == B else jnp.pad(state, ((0, b_pad - B), (0, 0)))
    state_p = state_p.astype(jnp.float32)

    w1, b1 = kparams["w1"], kparams["b1"]
    w2, b2 = kparams["w2"], kparams["b2"]
    w3_row, b3 = kparams["w3_row"], kparams["b3"]

    resident = lambda a: pl.BlockSpec(a.shape, lambda i: (0,) * a.ndim)

    cost = pl.CostEstimate(
        flops=2 * b_pad * (in_dim * fc1 + fc1 * fc2 + fc2),
        transcendentals=b_pad * (fc1 + fc2),
        bytes_accessed=(state_p.size * 4 + w1.size * 2 + w2.size * 2
                        + b1.size * 4 + b2.size * 4 + w3_row.size * 4
                        + b3.size * 4 + b_pad * 4),
    )

    kernel = functools.partial(critic_kernel, bf16_tanh=_use_bf16_tanh())

    out = pl.pallas_call(
        kernel,
        out_shape=jax.ShapeDtypeStruct((num_tiles, tb), jnp.float32),
        grid=(num_tiles,),
        in_specs=[
            pl.BlockSpec((tb, in_dim), lambda i: (i, 0)),       # state tile (f32)
            resident(w1),                                        # VMEM-resident
            resident(b1),
            resident(w2),
            resident(b2),
            resident(w3_row),
            pl.BlockSpec(memory_space=pltpu.MemorySpace.SMEM),   # b3 scalar
        ],
        out_specs=pl.BlockSpec((1, tb), lambda i: (i, 0)),       # lane-dense row
        compiler_params=pltpu.CompilerParams(
            dimension_semantics=("parallel",),   # v7x: shard batch over 2 TCs
        ),
        cost_estimate=cost,
    )(state_p, w1, b1, w2, b2, w3_row, b3)

    # [num_tiles, tb] -> [b_pad, 1] -> [B, 1]
    return out.reshape(b_pad, 1)[:B]


def init_params(key, input_dim, fc1_dims=128, fc2_dims=128):
    """Deterministic init mimicking PyTorch nn.Linear default
    (uniform in [-1/sqrt(fan_in), 1/sqrt(fan_in)])."""
    ks = jax.random.split(key, 6)

    def linear(kw, kb, fan_in, fan_out):
        bound = 1.0 / jnp.sqrt(jnp.float32(fan_in))
        w = jax.random.uniform(kw, (fan_in, fan_out), jnp.float32,
                               -bound, bound)
        b = jax.random.uniform(kb, (1, fan_out), jnp.float32, -bound, bound)
        return w, b

    w1, b1 = linear(ks[0], ks[1], input_dim, fc1_dims)
    w2, b2 = linear(ks[2], ks[3], fc1_dims, fc2_dims)
    w3, b3 = linear(ks[4], ks[5], fc2_dims, 1)
    return {"w1": w1, "b1": b1, "w2": w2, "b2": b2, "w3": w3, "b3": b3}


def reference_forward_f32(state, p):
    x = jnp.tanh(state @ p["w1"] + p["b1"])
    x = jnp.tanh(x @ p["w2"] + p["b2"])
    return x @ p["w3"] + p["b3"]


def reference_forward_bf16(state, p, bf16_tanh):
    bf = jnp.bfloat16
    x = jnp.dot(state.astype(bf), p["w1"].astype(bf),
                preferred_element_type=jnp.float32) + p["b1"]
    x = jnp.tanh(x.astype(bf)) if bf16_tanh else jnp.tanh(x).astype(bf)
    x = jnp.dot(x, p["w2"].astype(bf),
                preferred_element_type=jnp.float32) + p["b2"]
    x = jnp.tanh(x.astype(bf)) if bf16_tanh else jnp.tanh(x).astype(bf)
    return x.astype(jnp.float32) @ p["w3"] + p["b3"]


if __name__ == "__main__":
    key = jax.random.PRNGKey(0)
    k_state, k_params = jax.random.split(key)

    batch = 8
    input_dim = 16          # input_dims = (16,)
    fc1_dims = 128
    fc2_dims = 128

    state = jax.random.normal(k_state, (batch, input_dim), jnp.float32)
    params = init_params(k_params, input_dim, fc1_dims, fc2_dims)
    kparams = prepare_params(params)        # one-time bf16/transpose conversion

    fwd = jax.jit(continuous_critic_forward)  # fuses the pad with the call
    v = fwd(state, kparams)
    v = jax.block_until_ready(v)

    bf16_tanh = _use_bf16_tanh()
    v_ref_bf = reference_forward_bf16(state, params, bf16_tanh)
    v_ref_f32 = reference_forward_f32(state, params)

    assert v.shape == (batch, 1)
    # Check against a bf16-mirroring reference, loose check vs f32 module math.
    assert jnp.allclose(v, v_ref_bf, atol=1e-2, rtol=1e-2), \
        "mismatch vs bf16 reference"
    assert jnp.allclose(v, v_ref_f32, atol=5e-2, rtol=5e-2), \
        "mismatch vs f32 reference"

    # TODO(synk): optimizer (Adam), device placement and checkpoint save/load
    # from the PyTorch module are training/IO concerns, not part of forward().

    print("KERNEL_OK")
</pallas_src>

<mosaic_0001>
module attributes {stable_mosaic.version = 11 : i64} {
  func.func @critic_kernel(%arg0: i32, %arg1: memref<16x16xf32, #tpu.memory_space<vmem>>, %arg2: memref<16x128xbf16, #tpu.memory_space<vmem>>, %arg3: memref<1x128xf32, #tpu.memory_space<vmem>>, %arg4: memref<128x128xbf16, #tpu.memory_space<vmem>>, %arg5: memref<1x128xf32, #tpu.memory_space<vmem>>, %arg6: memref<1x128xf32, #tpu.memory_space<vmem>>, %arg7: memref<1x1xf32, #tpu.memory_space<smem>>, %arg8: memref<1x16xf32, #tpu.memory_space<vmem>>) attributes {dimension_semantics = [#tpu.dimension_semantics<parallel>], iteration_bounds = array<i64: 1>, scalar_prefetch = 0 : i64, scratch_operands = 0 : i64, tpu.core_type = #tpu.core_type<tc>, window_params = [{transform_indices = @transform_0, window_bounds = array<i64: 16, 16>}, {pipeline_mode = #tpu.pipeline_mode<synchronous>, transform_indices = @transform_1, window_bounds = array<i64: 16, 128>}, {pipeline_mode = #tpu.pipeline_mode<synchronous>, transform_indices = @transform_2, window_bounds = array<i64: 1, 128>}, {pipeline_mode = #tpu.pipeline_mode<synchronous>, transform_indices = @transform_3, window_bounds = array<i64: 128, 128>}, {pipeline_mode = #tpu.pipeline_mode<synchronous>, transform_indices = @transform_4, window_bounds = array<i64: 1, 128>}, {pipeline_mode = #tpu.pipeline_mode<synchronous>, transform_indices = @transform_5, window_bounds = array<i64: 1, 128>}, {transform_indices = @transform_6, window_bounds = array<i64: 1, 1>}, {transform_indices = @transform_7, window_bounds = array<i64: 1, 16>}]} {
    %c0 = arith.constant 0 : index
    %c0_0 = arith.constant 0 : index
    %0 = vector.load %arg1[%c0, %c0_0] : memref<16x16xf32, #tpu.memory_space<vmem>>, vector<16x16xf32>
    %1 = arith.truncf %0 : vector<16x16xf32> to vector<16x16xbf16>
    %c0_1 = arith.constant 0 : index
    %c0_2 = arith.constant 0 : index
    %2 = vector.load %arg2[%c0_1, %c0_2] : memref<16x128xbf16, #tpu.memory_space<vmem>>, vector<16x128xbf16>
    %cst = arith.constant dense<0.000000e+00> : vector<16x128xf32>
    %3 = tpu.matmul %1, %2, %cst {dimension_numbers = #tpu.dot_dimension_numbers<[1], [0], [0], [1], [0, 0, 1, 1], [], []>} : vector<16x16xbf16>, vector<16x128xbf16>, vector<16x128xf32> -> vector<16x128xf32>
    %c0_3 = arith.constant 0 : index
    %c0_4 = arith.constant 0 : index
    %4 = vector.load %arg3[%c0_3, %c0_4] : memref<1x128xf32, #tpu.memory_space<vmem>>, vector<1x128xf32>
    %5 = vector.broadcast %4 : vector<1x128xf32> to vector<16x128xf32>
    %6 = arith.addf %3, %5 : vector<16x128xf32>
    %7 = arith.truncf %6 : vector<16x128xf32> to vector<16x128xbf16>
    %8 = math.tanh %7 : vector<16x128xbf16>
    %c0_5 = arith.constant 0 : index
    %c0_6 = arith.constant 0 : index
    %9 = vector.load %arg4[%c0_5, %c0_6] : memref<128x128xbf16, #tpu.memory_space<vmem>>, vector<128x128xbf16>
    %cst_7 = arith.constant dense<0.000000e+00> : vector<16x128xf32>
    %10 = tpu.matmul %8, %9, %cst_7 {dimension_numbers = #tpu.dot_dimension_numbers<[1], [0], [0], [1], [0, 0, 1, 1], [], []>} : vector<16x128xbf16>, vector<128x128xbf16>, vector<16x128xf32> -> vector<16x128xf32>
    %c0_8 = arith.constant 0 : index
    %c0_9 = arith.constant 0 : index
    %11 = vector.load %arg5[%c0_8, %c0_9] : memref<1x128xf32, #tpu.memory_space<vmem>>, vector<1x128xf32>
    %12 = vector.broadcast %11 : vector<1x128xf32> to vector<16x128xf32>
    %13 = arith.addf %10, %12 : vector<16x128xf32>
    %14 = arith.truncf %13 : vector<16x128xf32> to vector<16x128xbf16>
    %15 = math.tanh %14 : vector<16x128xbf16>
    %c0_10 = arith.constant 0 : index
    %c0_11 = arith.constant 0 : index
    %16 = vector.load %arg6[%c0_10, %c0_11] : memref<1x128xf32, #tpu.memory_space<vmem>>, vector<1x128xf32>
    %17 = arith.extf %15 : vector<16x128xbf16> to vector<16x128xf32>
    %cst_12 = arith.constant dense<0.000000e+00> : vector<1x16xf32>
    %18 = tpu.matmul %16, %17, %cst_12 {dimension_numbers = #tpu.dot_dimension_numbers<[1], [1], [0], [0], [0, 0, 1, 0], [], []>} : vector<1x128xf32>, vector<16x128xf32>, vector<1x16xf32> -> vector<1x16xf32>
    %c0_13 = arith.constant 0 : index
    %c0_14 = arith.constant 0 : index
    %19 = memref.load %arg7[%c0_13, %c0_14] : memref<1x1xf32, #tpu.memory_space<smem>>
    %20 = vector.broadcast %19 : f32 to vector<1x16xf32>
    %21 = arith.addf %18, %20 : vector<1x16xf32>
    %c0_15 = arith.constant 0 : index
    %c0_16 = arith.constant 0 : index
    %22 = vector.load %arg8[%c0_15, %c0_16] : memref<1x16xf32, #tpu.memory_space<vmem>>, vector<1x16xf32>
    tpu.vector_store %arg8[%c0_15, %c0_16], %21 {strides = array<i32>} : memref<1x16xf32, #tpu.memory_space<vmem>>, vector<1x16xf32>,
    return
  }
  func.func @transform_0(%arg0: i32) -> (i32, i32) {
    %c0_i32 = arith.constant 0 : i32
    %c0_i32_0 = arith.constant 0 : i32
    return %arg0, %c0_i32 : i32, i32
  }
  func.func @transform_1(%arg0: i32) -> (i32, i32) {
    %c0_i32 = arith.constant 0 : i32
    %c0_i32_0 = arith.constant 0 : i32
    %c0_i32_1 = arith.constant 0 : i32
    return %c0_i32, %c0_i32_0 : i32, i32
  }
  func.func @transform_2(%arg0: i32) -> (i32, i32) {
    %c0_i32 = arith.constant 0 : i32
    %c0_i32_0 = arith.constant 0 : i32
    %c0_i32_1 = arith.constant 0 : i32
    return %c0_i32, %c0_i32_0 : i32, i32
  }
  func.func @transform_3(%arg0: i32) -> (i32, i32) {
    %c0_i32 = arith.constant 0 : i32
    %c0_i32_0 = arith.constant 0 : i32
    %c0_i32_1 = arith.constant 0 : i32
    return %c0_i32, %c0_i32_0 : i32, i32
  }
  func.func @transform_4(%arg0: i32) -> (i32, i32) {
    %c0_i32 = arith.constant 0 : i32
    %c0_i32_0 = arith.constant 0 : i32
    %c0_i32_1 = arith.constant 0 : i32
    return %c0_i32, %c0_i32_0 : i32, i32
  }
  func.func @transform_5(%arg0: i32) -> (i32, i32) {
    %c0_i32 = arith.constant 0 : i32
    %c0_i32_0 = arith.constant 0 : i32
    %c0_i32_1 = arith.constant 0 : i32
    return %c0_i32, %c0_i32_0 : i32, i32
  }
  func.func @transform_6(%arg0: i32) -> (i32, i32) {
    %c0_i32 = arith.constant 0 : i32
    %c0_i32_0 = arith.constant 0 : i32
    %c0_i32_1 = arith.constant 0 : i32
    return %c0_i32, %c0_i32_0 : i32, i32
  }
  func.func @transform_7(%arg0: i32) -> (i32, i32) {
    %c0_i32 = arith.constant 0 : i32
    %c0_i32_0 = arith.constant 0 : i32
    return %arg0, %c0_i32 : i32, i32
  }
}

</mosaic_0001>

<llo_original>
// kernel: continuous_critic_forward.1
$region0: #{continuous_critic_forward.1}
  #allocation0 [shape = 'u32[]', space=smem, size = 0x4, offset = 0x4, fixed_abs, tag = 'smem constant byte address 0x4 - core index']
  #allocation1 [shape = 'u32[72,128]{1,0:T(1,128)}', space=vmem, size = 0x9000, scoped, tag = 'internal scratch']
  #allocation2 [shape = 'f32[1,1]{1,0:T(1,128)S(6)}', space=smem, size = 0x200, scoped, tag = 'scoped memory for continuous_critic_forward.1']
  %s0 = inlined_call_operand.vmem [shape: f32[16,16], index: 0, kind: input, shape index: {}]
  %s1 = inlined_call_operand.vmem [shape: bf16[16,128], index: 1, kind: input, shape index: {}]
  %s2 = inlined_call_operand.vmem [shape: f32[1,128], index: 2, kind: input, shape index: {}]
  %s3 = inlined_call_operand.hbm [shape: bf16[128,128], index: 3, kind: input, shape index: {}]
  %s4 = inlined_call_operand.vmem [shape: f32[1,128], index: 4, kind: input, shape index: {}]
  %s5 = inlined_call_operand.vmem [shape: f32[1,128], index: 5, kind: input, shape index: {}]
  %s6 = inlined_call_operand.<no memory space> [shape: f32[1,1], index: 6, kind: input, shape index: {}]
  %s7 = inlined_call_operand.vmem [shape: f32[1,16], index: 7, kind: output, shape index: {}]
  %s8 = sld [smem:[#allocation0]]
  $region42: #{continuous_critic_forward.1} parent=0
    _
  %s10 = ssub.s32 1, %s8
  %s11 = scalar_select 0, %s10, %s8
  %12 = sst [smem:[#allocation2]] %s6
  $region1: #{continuous_critic_forward.1} parent=0
    #allocation3 [shape = 'u8[32768]{0}', space=vmem, size = 0x8000, scoped, tag = 'input window, operand 3, single buffered']
    #allocation4 [shape = 's32[1]{0}', space=sflag, size = 0x4, scoped, tag = 'scoped memory for continuous_critic_forward.1']
    %13 = vsyncpa [#allocation4], 0
    // Predicated region
    $region2: #{continuous_critic_forward.1} parent=1 // pred_check
      _
    $region3: #{continuous_critic_forward.1} parent=1 // pred_check_branch
      %15 = sbr.rel (0) target = $region5
    $region4: #{continuous_critic_forward.1} parent=1 // pred_region
      _
    $region5: #{continuous_critic_forward.1} parent=1 // pred_fallthru
      _
    // Predicated region
    $region6: #{continuous_critic_forward.1} parent=1 // pred_check
      _
    $region7: #{continuous_critic_forward.1} parent=1 // pred_check_branch
      %17 = sbr.rel (0) target = $region9
    $region8: #{continuous_critic_forward.1} parent=1 // pred_region
      _
    $region9: #{continuous_critic_forward.1} parent=1 // pred_fallthru
      _
    // Predicated region
    $region10: #{continuous_critic_forward.1} parent=1 // pred_check
      _
    $region11: #{continuous_critic_forward.1} parent=1 // pred_check_branch
      %19 = sbr.rel (0) target = $region13
    $region12: #{continuous_critic_forward.1} parent=1 // pred_region
      _
    $region13: #{continuous_critic_forward.1} parent=1 // pred_fallthru
      _
    // Predicated region
    $region14: #{continuous_critic_forward.1} parent=1 // pred_check
      _
    $region15: #{continuous_critic_forward.1} parent=1 // pred_check_branch
      %21 = sbr.rel (0) target = $region17
    $region16: #{continuous_critic_forward.1} parent=1 // pred_region
      %23 = vsyncadd [#allocation4], 0
      %s24 = sshll.u32 %s3, 4
      %s25 = int_to_ptr.hbm [resolvable:$true] %s24
      %s26 = sshll.u32 [#allocation3], 4
      %s27 = int_to_ptr.vmem [resolvable:$true] %s26
      %32 = dma.hbm_to_vmem [thread:$0]  %s25, 1024, %s27, [#allocation4], 64, 64, 4
    $region17: #{continuous_critic_forward.1} parent=1 // pred_fallthru
      _
    // Predicated region
    $region18: #{continuous_critic_forward.1} parent=1 // pred_check
      _
    $region19: #{continuous_critic_forward.1} parent=1 // pred_check_branch
      %34 = sbr.rel (0) target = $region21
    $region20: #{continuous_critic_forward.1} parent=1 // pred_region
      _
    $region21: #{continuous_critic_forward.1} parent=1 // pred_fallthru
      _
    // Predicated region
    $region22: #{continuous_critic_forward.1} parent=1 // pred_check
      _
    $region23: #{continuous_critic_forward.1} parent=1 // pred_check_branch
      %36 = sbr.rel (0) target = $region25
    $region24: #{continuous_critic_forward.1} parent=1 // pred_region
      _
    $region25: #{continuous_critic_forward.1} parent=1 // pred_fallthru
      _
    // Predicated region
    $region26: #{continuous_critic_forward.1} parent=1 // pred_check
      _
    $region27: #{continuous_critic_forward.1} parent=1 // pred_check_branch
      %38 = sbr.rel (0) target = $region29
    $region28: #{continuous_critic_forward.1} parent=1 // pred_region
      _
    $region29: #{continuous_critic_forward.1} parent=1 // pred_fallthru
      _
    // Predicated region
    $region30: #{continuous_critic_forward.1} parent=1 // pred_check
      _
    $region31: #{continuous_critic_forward.1} parent=1 // pred_check_branch
      %40 = sbr.rel (0) target = $region33
    $region32: #{continuous_critic_forward.1} parent=1 // pred_region
      %42 = dma.done [#allocation4], 1024
    $region33: #{continuous_critic_forward.1} parent=1 // pred_fallthru
      _
    %v44 = vld [vmem:[%s0] sm:$0xff]
    %v45 = vld [vmem:[%s0 + $0x8] sm:$0xff]
    %v46 = vpack.c.bf16 %v45, %v44
    %v47 = vld [vmem:[%s1] sm:$0xf]
    %v48 = vld [vmem:[%s1 + $0x4] sm:$0xf]
    %v49 = vld [vmem:[%s2] sm:$0x1]
    %v51 = vperm.slane %v49, 0
    %v55 = vunpack.c.l.b16 %v47
    %v56 = vunpack.c.l.b16 %v48
    %v57 = vpack.c.b16 %v56, %v55
    %vm59 = vcmask 130048
    %v61 = vsel %vm59, %v46, 0
    %63 = vmatpush.bf16.msra.mxu0 0
    %64 = vmatpush.bf16.msra.mxu0 0
    %65 = vmatpush.bf16.msra.mxu0 0
    %66 = vmatpush.bf16.msra.mxu0 0
    %67 = vmatpush.bf16.msra.mxu0 0
    %68 = vmatpush.bf16.msra.mxu0 0
    %69 = vmatpush.bf16.msra.mxu0 0
    %70 = vmatpush.bf16.msra.mxu0 %v57
    %71 = vmatmul.bf16.gmra.mxu0 %v61
    %v72 = vpop.f32.mrf.mxu0
    %v73 = vadd.f32 %v51, %v72
    %v74 = vpop.f32.mrf.mxu0
    %v75 = vadd.f32 %v51, %v74
    %76 = vdwg.mxu0
    %v77 = vpack.c.bf16 %v75, %v73
    %v78 = vunpack.c.l.bf16 %v77
    %v79 = vunpack.c.h.bf16 %v77
    %v80 = vtanh.pop %v78
    %v81 = vtanh.pop %v79
    %v82 = vpack.c.bf16 %v81, %v80
    %v83 = vld [vmem:[#allocation3] sm:$0xf]
    %v84 = vld [vmem:[#allocation3 + $0x4] sm:$0xf]
    %v85 = vld [vmem:[#allocation3 + $0x8] sm:$0xf]
    %v86 = vld [vmem:[#allocation3 + $0xc] sm:$0xf]
    %v87 = vld [vmem:[#allocation3 + $0x10] sm:$0xf]
    %v88 = vld [vmem:[#allocation3 + $0x14] sm:$0xf]
    %v89 = vld [vmem:[#allocation3 + $0x18] sm:$0xf]
    %v90 = vld [vmem:[#allocation3 + $0x1c] sm:$0xf]
    %v91 = vld [vmem:[#allocation3 + $0x20] sm:$0xf]
    %v92 = vld [vmem:[#allocation3 + $0x24] sm:$0xf]
    %v93 = vld [vmem:[#allocation3 + $0x28] sm:$0xf]
    %v94 = vld [vmem:[#allocation3 + $0x2c] sm:$0xf]
    %v95 = vld [vmem:[#allocation3 + $0x30] sm:$0xf]
    %v96 = vld [vmem:[#allocation3 + $0x34] sm:$0xf]
    %v97 = vld [vmem:[#allocation3 + $0x38] sm:$0xf]
    %v98 = vld [vmem:[#allocation3 + $0x3c] sm:$0xf]
    %v99 = vld [vmem:[%s4] sm:$0x1]
    %v101 = vperm.slane %v99, 0
    %v119 = vunpack.c.l.b16 %v83
    %v120 = vunpack.c.l.b16 %v84
    %v121 = vunpack.c.l.b16 %v85
    %v122 = vunpack.c.l.b16 %v86
    %v123 = vunpack.c.l.b16 %v87
    %v124 = vunpack.c.l.b16 %v88
    %v125 = vunpack.c.l.b16 %v89
    %v126 = vunpack.c.l.b16 %v90
    %v127 = vunpack.c.l.b16 %v91
    %v128 = vunpack.c.l.b16 %v92
    %v129 = vunpack.c.l.b16 %v93
    %v130 = vunpack.c.l.b16 %v94
    %v131 = vunpack.c.l.b16 %v95
    %v132 = vunpack.c.l.b16 %v96
    %v133 = vunpack.c.l.b16 %v97
    %v134 = vunpack.c.l.b16 %v98
    %v135 = vpack.c.b16 %v120, %v119
    %v136 = vpack.c.b16 %v122, %v121
    %v137 = vpack.c.b16 %v124, %v123
    %v138 = vpack.c.b16 %v126, %v125
    %v139 = vpack.c.b16 %v128, %v127
    %v140 = vpack.c.b16 %v130, %v129
    %v141 = vpack.c.b16 %v132, %v131
    %v142 = vpack.c.b16 %v134, %v133
    %151 = vmatpush.bf16.msra.mxu0 %v142
    %152 = vmatpush.bf16.msra.mxu0 %v141
    %153 = vmatpush.bf16.msra.mxu0 %v140
    %154 = vmatpush.bf16.msra.mxu0 %v139
    %155 = vmatpush.bf16.msra.mxu0 %v138
    %156 = vmatpush.bf16.msra.mxu0 %v137
    %157 = vmatpush.bf16.msra.mxu0 %v136
    %158 = vmatpush.bf16.msra.mxu0 %v135
    %159 = vmatmul.bf16.gmra.mxu0 %v82
    %v160 = vpop.f32.mrf.mxu0
    %v161 = vadd.f32 %v101, %v160
    %v162 = vpop.f32.mrf.mxu0
    %v163 = vadd.f32 %v101, %v162
    %164 = vdwg.mxu0
    %v165 = vpack.c.bf16 %v163, %v161
    %v166 = vunpack.c.l.bf16 %v165
    %v167 = vunpack.c.h.bf16 %v165
    %v168 = vtanh.pop %v166
    %v169 = vtanh.pop %v167
    %v170 = vpack.c.bf16 %v169, %v168
    %v171 = vld [vmem:[%s5] sm:$0x1]
    %v172 = vunpack.c.l.bf16 %v170
    %v173 = vunpack.c.h.bf16 %v170
    %s174 = sld [smem:[#allocation2]]
    %v175 = vstv %s174
    %176 = vmatpush.xpose.msra.mxu0 0.0
    %177 = vmatpush.xpose.msra.mxu0 0.0
    %178 = vmatpush.xpose.msra.mxu0 0.0
    %179 = vmatpush.xpose.msra.mxu0 0.0
    %180 = vmatpush.xpose.msra.mxu0 0.0
    %181 = vmatpush.xpose.msra.mxu0 0.0
    %182 = vmatpush.xpose.msra.mxu0 0.0
    %183 = vmatpush.xpose.msra.mxu0 0.0
    %184 = vmatpush.xpose.msra.mxu0 0.0
    %185 = vmatpush.xpose.msra.mxu0 0.0
    %186 = vmatpush.xpose.msra.mxu0 0.0
    %187 = vmatpush.xpose.msra.mxu0 0.0
    %188 = vmatpush.xpose.msra.mxu0 0.0
    %189 = vmatpush.xpose.msra.mxu0 0.0
    %190 = vmatpush.xpose.msra.mxu0 %v173
    %191 = vmatpush.xpose.msra.mxu0 %v172
    %192 = vmatmul.f32.gmra.mxu0 %v171
    %v193 = vpop.f32.mrf.mxu0
    %v194 = vadd.f32 %v175, %v193
    %195 = vdwg.mxu0
    %vm196 = vcmask 122880
    %197 = vst.msk [vmem:[%s7] sm:$0x1] %vm196, %v194
    // Predicated region
    $region34: #{continuous_critic_forward.1} parent=1 // pred_check
      _
    $region35: #{continuous_critic_forward.1} parent=1 // pred_check_branch
      %199 = sbr.rel (0) target = $region37
    $region36: #{continuous_critic_forward.1} parent=1 // pred_region
      _
    $region37: #{continuous_critic_forward.1} parent=1 // pred_fallthru
      _
    // Predicated region
    $region38: #{continuous_critic_forward.1} parent=1 // pred_check
      _
    $region39: #{continuous_critic_forward.1} parent=1 // pred_check_branch
      %201 = sbr.rel (0) target = $region41
    $region40: #{continuous_critic_forward.1} parent=1 // pred_region
      _
    $region41: #{continuous_critic_forward.1} parent=1 // pred_fallthru
      _
    %202 = vsyncpa [#allocation4], 1

</llo_original>
